<compile_context>
chip_gen: v7x
topology: tpu7x:2x2x1
jax: 0.10.0
libtpu: 0.0.40
codegen_flags: <defaults>
</compile_context>

<pallas_src>
import math

import jax
import jax.numpy as jnp
import numpy as np
from jax.experimental import pallas as pl
from jax.experimental.pallas import tpu as pltpu


# ---- the Pallas kernel: one (TB, in_size) row tile per grid step --------------
def pwl_kernel(x_ref, w1_ref, b1_ref, w2_ref, b2_ref, o_ref):
    # h = relu(x @ W1 + b1)
    h = jnp.dot(x_ref[...], w1_ref[...], preferred_element_type=jnp.float32)
    h = jnp.maximum(h + b1_ref[...], 0.0)
    # o = h @ W2 + b2
    o = jnp.dot(h, w2_ref[...], preferred_element_type=jnp.float32) + b2_ref[...]
    o_ref[...] = o.astype(o_ref.dtype)


# ---- wrapper -------------------------------------------------------------------
def position_wise_linear(x, w1, b1, w2, b2, *, tb=128):
    """x: (..., in_size); weights stored as (fan_in, fan_out); biases as (1, fan_out)."""
    in_size = x.shape[-1]
    hidden_size = w1.shape[-1]
    out_size = w2.shape[-1]
    lead_shape = x.shape[:-1]

    x2 = x.reshape(-1, in_size)
    n = x2.shape[0]
    n_pad = pl.cdiv(n, tb) * tb
    if n_pad != n:
        x2 = jnp.pad(x2, ((0, n_pad - n), (0, 0)))

    grid = (n_pad // tb,)

    out = pl.pallas_call(
        pwl_kernel,
        out_shape=jax.ShapeDtypeStruct((n_pad, out_size), x.dtype),
        grid=grid,
        in_specs=[
            pl.BlockSpec((tb, in_size), lambda i: (i, 0)),
            pl.BlockSpec((in_size, hidden_size), lambda i: (0, 0)),
            pl.BlockSpec((1, hidden_size), lambda i: (0, 0)),
            pl.BlockSpec((hidden_size, out_size), lambda i: (0, 0)),
            pl.BlockSpec((1, out_size), lambda i: (0, 0)),
        ],
        out_specs=pl.BlockSpec((tb, out_size), lambda i: (i, 0)),
        compiler_params=pltpu.CompilerParams(
            dimension_semantics=("parallel",),
        ),
    )(x2, w1, b1, w2, b2)

    out = out[:n]
    return out.reshape(*lead_shape, out_size)


# ---- deterministic parameter init (mirrors torch.nn.Linear defaults) ------------
def init_params(key, input_size, hidden_size, output_size):
    def linear(k, fan_in, fan_out):
        kw, kb = jax.random.split(k)
        bound = 1.0 / math.sqrt(fan_in)
        W = jax.random.uniform(kw, (fan_in, fan_out), jnp.float32, -bound, bound)
        b = jax.random.uniform(kb, (1, fan_out), jnp.float32, -bound, bound)
        return W, b

    k1, k2 = jax.random.split(key)
    w1, b1 = linear(k1, input_size, hidden_size)
    w2, b2 = linear(k2, hidden_size, output_size)
    return w1, b1, w2, b2


# ---- pure-JAX reference (mirrors the PyTorch forward) ----------------------------
def reference(x, w1, b1, w2, b2):
    h = jnp.maximum(x @ w1 + b1, 0.0)
    return h @ w2 + b2


if __name__ == "__main__":
    key = jax.random.PRNGKey(0)
    kx, kp = jax.random.split(key)

    # Small shapes consistent with a position-wise MLP over a (batch, seq, feature) tensor.
    B, S = 2, 8
    INPUT_SIZE, HIDDEN_SIZE, OUTPUT_SIZE = 16, 32, 16

    x = jax.random.normal(kx, (B, S, INPUT_SIZE), jnp.float32)
    w1, b1, w2, b2 = init_params(kp, INPUT_SIZE, HIDDEN_SIZE, OUTPUT_SIZE)

    out = position_wise_linear(x, w1, b1, w2, b2)
    out = jax.block_until_ready(out)

    ref = reference(x, w1, b1, w2, b2)
    np.testing.assert_allclose(np.asarray(out), np.asarray(ref), rtol=1e-5, atol=1e-5)
    print("KERNEL_OK")
</pallas_src>

<mosaic_0001>
module attributes {stable_mosaic.version = 11 : i64} {
  func.func @pwl_kernel(%arg0: i32, %arg1: memref<128x16xf32, #tpu.memory_space<vmem>>, %arg2: memref<16x32xf32, #tpu.memory_space<vmem>>, %arg3: memref<1x32xf32, #tpu.memory_space<vmem>>, %arg4: memref<32x16xf32, #tpu.memory_space<vmem>>, %arg5: memref<1x16xf32, #tpu.memory_space<vmem>>, %arg6: memref<128x16xf32, #tpu.memory_space<vmem>>) attributes {dimension_semantics = [#tpu.dimension_semantics<parallel>], iteration_bounds = array<i64: 1>, scalar_prefetch = 0 : i64, scratch_operands = 0 : i64, tpu.core_type = #tpu.core_type<tc>, window_params = [{transform_indices = @transform_0, window_bounds = array<i64: 128, 16>}, {pipeline_mode = #tpu.pipeline_mode<synchronous>, transform_indices = @transform_1, window_bounds = array<i64: 16, 32>}, {pipeline_mode = #tpu.pipeline_mode<synchronous>, transform_indices = @transform_2, window_bounds = array<i64: 1, 32>}, {pipeline_mode = #tpu.pipeline_mode<synchronous>, transform_indices = @transform_3, window_bounds = array<i64: 32, 16>}, {pipeline_mode = #tpu.pipeline_mode<synchronous>, transform_indices = @transform_4, window_bounds = array<i64: 1, 16>}, {transform_indices = @transform_5, window_bounds = array<i64: 128, 16>}]} {
    %c0 = arith.constant 0 : index
    %c0_0 = arith.constant 0 : index
    %0 = vector.load %arg1[%c0, %c0_0] : memref<128x16xf32, #tpu.memory_space<vmem>>, vector<128x16xf32>
    %c0_1 = arith.constant 0 : index
    %c0_2 = arith.constant 0 : index
    %1 = vector.load %arg2[%c0_1, %c0_2] : memref<16x32xf32, #tpu.memory_space<vmem>>, vector<16x32xf32>
    %cst = arith.constant dense<0.000000e+00> : vector<128x32xf32>
    %2 = tpu.matmul %0, %1, %cst {dimension_numbers = #tpu.dot_dimension_numbers<[1], [0], [0], [1], [0, 0, 1, 1], [], []>} : vector<128x16xf32>, vector<16x32xf32>, vector<128x32xf32> -> vector<128x32xf32>
    %c0_3 = arith.constant 0 : index
    %c0_4 = arith.constant 0 : index
    %3 = vector.load %arg3[%c0_3, %c0_4] : memref<1x32xf32, #tpu.memory_space<vmem>>, vector<1x32xf32>
    %4 = vector.broadcast %3 : vector<1x32xf32> to vector<128x32xf32>
    %5 = arith.addf %2, %4 : vector<128x32xf32>
    %cst_5 = arith.constant 0.000000e+00 : f32
    %6 = vector.broadcast %cst_5 : f32 to vector<128x32xf32>
    %7 = arith.maximumf %5, %6 : vector<128x32xf32>
    %c0_6 = arith.constant 0 : index
    %c0_7 = arith.constant 0 : index
    %8 = vector.load %arg4[%c0_6, %c0_7] : memref<32x16xf32, #tpu.memory_space<vmem>>, vector<32x16xf32>
    %cst_8 = arith.constant dense<0.000000e+00> : vector<128x16xf32>
    %9 = tpu.matmul %7, %8, %cst_8 {dimension_numbers = #tpu.dot_dimension_numbers<[1], [0], [0], [1], [0, 0, 1, 1], [], []>} : vector<128x32xf32>, vector<32x16xf32>, vector<128x16xf32> -> vector<128x16xf32>
    %c0_9 = arith.constant 0 : index
    %c0_10 = arith.constant 0 : index
    %10 = vector.load %arg5[%c0_9, %c0_10] : memref<1x16xf32, #tpu.memory_space<vmem>>, vector<1x16xf32>
    %11 = vector.broadcast %10 : vector<1x16xf32> to vector<128x16xf32>
    %12 = arith.addf %9, %11 : vector<128x16xf32>
    %c0_11 = arith.constant 0 : index
    %c0_12 = arith.constant 0 : index
    %13 = vector.load %arg6[%c0_11, %c0_12] : memref<128x16xf32, #tpu.memory_space<vmem>>, vector<128x16xf32>
    tpu.vector_store %arg6[%c0_11, %c0_12], %12 {strides = array<i32>} : memref<128x16xf32, #tpu.memory_space<vmem>>, vector<128x16xf32>,
    return
  }
  func.func @transform_0(%arg0: i32) -> (i32, i32) {
    %c0_i32 = arith.constant 0 : i32
    %c0_i32_0 = arith.constant 0 : i32
    return %arg0, %c0_i32 : i32, i32
  }
  func.func @transform_1(%arg0: i32) -> (i32, i32) {
    %c0_i32 = arith.constant 0 : i32
    %c0_i32_0 = arith.constant 0 : i32
    %c0_i32_1 = arith.constant 0 : i32
    return %c0_i32, %c0_i32_0 : i32, i32
  }
  func.func @transform_2(%arg0: i32) -> (i32, i32) {
    %c0_i32 = arith.constant 0 : i32
    %c0_i32_0 = arith.constant 0 : i32
    %c0_i32_1 = arith.constant 0 : i32
    return %c0_i32, %c0_i32_0 : i32, i32
  }
  func.func @transform_3(%arg0: i32) -> (i32, i32) {
    %c0_i32 = arith.constant 0 : i32
    %c0_i32_0 = arith.constant 0 : i32
    %c0_i32_1 = arith.constant 0 : i32
    return %c0_i32, %c0_i32_0 : i32, i32
  }
  func.func @transform_4(%arg0: i32) -> (i32, i32) {
    %c0_i32 = arith.constant 0 : i32
    %c0_i32_0 = arith.constant 0 : i32
    %c0_i32_1 = arith.constant 0 : i32
    return %c0_i32, %c0_i32_0 : i32, i32
  }
  func.func @transform_5(%arg0: i32) -> (i32, i32) {
    %c0_i32 = arith.constant 0 : i32
    %c0_i32_0 = arith.constant 0 : i32
    return %arg0, %c0_i32 : i32, i32
  }
}

</mosaic_0001>

<llo_original>
// kernel: tpu_custom_call.1
$region0: #{tpu_custom_call.1}
  #allocation0 [shape = 'u32[]', space=smem, size = 0x4, offset = 0x4, fixed_abs, tag = 'smem constant byte address 0x4 - core index']
  #allocation1 [shape = 'u32[144,128]{1,0:T(1,128)}', space=vmem, size = 0x12000, scoped, tag = 'internal scratch']
  %s0 = inlined_call_operand.vmem [shape: f32[128,16], index: 0, kind: input, shape index: {}]
  %s1 = inlined_call_operand.vmem [shape: f32[16,32], index: 1, kind: input, shape index: {}]
  %s2 = inlined_call_operand.vmem [shape: f32[1,32], index: 2, kind: input, shape index: {}]
  %s3 = inlined_call_operand.vmem [shape: f32[32,16], index: 3, kind: input, shape index: {}]
  %s4 = inlined_call_operand.vmem [shape: f32[1,16], index: 4, kind: input, shape index: {}]
  %s5 = inlined_call_operand.vmem [shape: f32[128,16], index: 5, kind: output, shape index: {}]
  %s6 = sld [smem:[#allocation0]]
  $region30: #{tpu_custom_call.1} parent=0
    _
  %s8 = ssub.s32 1, %s6
  %s9 = scalar_select 0, %s8, %s6
  // Predicated region
  $region2: #{tpu_custom_call.1} parent=0 // pred_check
    _
  $region3: #{tpu_custom_call.1} parent=0 // pred_check_branch
    %11 = sbr.rel (0) target = $region5
  $region4: #{tpu_custom_call.1} parent=0 // pred_region
    _
  $region5: #{tpu_custom_call.1} parent=0 // pred_fallthru
    _
  // Predicated region
  $region6: #{tpu_custom_call.1} parent=0 // pred_check
    _
  $region7: #{tpu_custom_call.1} parent=0 // pred_check_branch
    %13 = sbr.rel (0) target = $region9
  $region8: #{tpu_custom_call.1} parent=0 // pred_region
    _
  $region9: #{tpu_custom_call.1} parent=0 // pred_fallthru
    _
  // Predicated region
  $region10: #{tpu_custom_call.1} parent=0 // pred_check
    _
  $region11: #{tpu_custom_call.1} parent=0 // pred_check_branch
    %15 = sbr.rel (0) target = $region13
  $region12: #{tpu_custom_call.1} parent=0 // pred_region
    _
  $region13: #{tpu_custom_call.1} parent=0 // pred_fallthru
    _
  // Predicated region
  $region14: #{tpu_custom_call.1} parent=0 // pred_check
    _
  $region15: #{tpu_custom_call.1} parent=0 // pred_check_branch
    %17 = sbr.rel (0) target = $region17
  $region16: #{tpu_custom_call.1} parent=0 // pred_region
    _
  $region17: #{tpu_custom_call.1} parent=0 // pred_fallthru
    _
  // Predicated region
  $region18: #{tpu_custom_call.1} parent=0 // pred_check
    _
  $region19: #{tpu_custom_call.1} parent=0 // pred_check_branch
    %19 = sbr.rel (0) target = $region21
  $region20: #{tpu_custom_call.1} parent=0 // pred_region
    _
  $region21: #{tpu_custom_call.1} parent=0 // pred_fallthru
    _
  %v20 = vld [vmem:[%s0] sm:$0xff]
  %v21 = vld [vmem:[%s0 + $0x8] sm:$0xff]
  %v22 = vld [vmem:[%s0 + $0x10] sm:$0xff]
  %v23 = vld [vmem:[%s0 + $0x18] sm:$0xff]
  %v24 = vld [vmem:[%s0 + $0x20] sm:$0xff]
  %v25 = vld [vmem:[%s0 + $0x28] sm:$0xff]
  %v26 = vld [vmem:[%s0 + $0x30] sm:$0xff]
  %v27 = vld [vmem:[%s0 + $0x38] sm:$0xff]
  %v28 = vld [vmem:[%s0 + $0x40] sm:$0xff]
  %v29 = vld [vmem:[%s0 + $0x48] sm:$0xff]
  %v30 = vld [vmem:[%s0 + $0x50] sm:$0xff]
  %v31 = vld [vmem:[%s0 + $0x58] sm:$0xff]
  %v32 = vld [vmem:[%s0 + $0x60] sm:$0xff]
  %v33 = vld [vmem:[%s0 + $0x68] sm:$0xff]
  %v34 = vld [vmem:[%s0 + $0x70] sm:$0xff]
  %v35 = vld [vmem:[%s0 + $0x78] sm:$0xff]
  %v36 = vld [vmem:[%s1] sm:$0xff]
  %v37 = vld [vmem:[%s1 + $0x8] sm:$0xff]
  %v38 = vld [vmem:[%s2] sm:$0x1]
  %v40 = vlaneseq
  %v41 = vshrl.u32 %v40, 7
  %v42 = vsub.s32 0, %v41
  %v43 = vrot.slane %v38, %v42
  %vm45 = vcmask 130048
  %v47 = vsel %vm45, %v20, 0
  %v50 = vsel %vm45, %v21, 0
  %v53 = vsel %vm45, %v22, 0
  %v56 = vsel %vm45, %v23, 0
  %v59 = vsel %vm45, %v24, 0
  %v62 = vsel %vm45, %v25, 0
  %v65 = vsel %vm45, %v26, 0
  %v68 = vsel %vm45, %v27, 0
  %v71 = vsel %vm45, %v28, 0
  %v74 = vsel %vm45, %v29, 0
  %v77 = vsel %vm45, %v30, 0
  %v80 = vsel %vm45, %v31, 0
  %v83 = vsel %vm45, %v32, 0
  %v86 = vsel %vm45, %v33, 0
  %v89 = vsel %vm45, %v34, 0
  %v92 = vsel %vm45, %v35, 0
  %94 = vmatprep.subr.mxu0 0.0
  %95 = vmatpush1.msra.mxu0 %v36
  %96 = vmatprep.subr.mxu0 0.0
  %97 = vmatpush1.msra.mxu0 %v37
  %98 = vmatprep.subr.mxu0 0.0
  %99 = vmatpush1.msra.mxu0 0.0
  %100 = vmatprep.subr.mxu0 0.0
  %101 = vmatpush1.msra.mxu0 0.0
  %102 = vmatprep.subr.mxu0 0.0
  %103 = vmatpush1.msra.mxu0 0.0
  %104 = vmatprep.subr.mxu0 0.0
  %105 = vmatpush1.msra.mxu0 0.0
  %106 = vmatprep.subr.mxu0 0.0
  %107 = vmatpush1.msra.mxu0 0.0
  %108 = vmatprep.subr.mxu0 0.0
  %109 = vmatpush1.msra.mxu0 0.0
  %110 = vmatprep.subr.mxu0 0.0
  %111 = vmatpush1.msra.mxu0 0.0
  %112 = vmatprep.subr.mxu0 0.0
  %113 = vmatpush1.msra.mxu0 0.0
  %114 = vmatprep.subr.mxu0 0.0
  %115 = vmatpush1.msra.mxu0 0.0
  %116 = vmatprep.subr.mxu0 0.0
  %117 = vmatpush1.msra.mxu0 0.0
  %118 = vmatprep.subr.mxu0 0.0
  %119 = vmatpush1.msra.mxu0 0.0
  %120 = vmatprep.subr.mxu0 0.0
  %121 = vmatpush1.msra.mxu0 0.0
  %122 = vmatprep.subr.mxu0 0.0
  %123 = vmatpush1.msra.mxu0 0.0
  %124 = vmatprep.subr.mxu0 0.0
  %125 = vmatpush1.msra.mxu0 0.0
  %126 = vmatprep.subr.mxu0 0.0
  %127 = vmatpush1.msra.mxu0 0.0
  %128 = vmatprep.subr.mxu0 0.0
  %129 = vmatpush1.msra.mxu0 0.0
  %130 = vmatprep.subr.mxu0 0.0
  %131 = vmatpush1.msra.mxu0 0.0
  %132 = vmatprep.subr.mxu0 0.0
  %133 = vmatpush1.msra.mxu0 0.0
  %134 = vmatprep.subr.mxu0 0.0
  %135 = vmatpush1.msra.mxu0 0.0
  %136 = vmatprep.subr.mxu0 0.0
  %137 = vmatpush1.msra.mxu0 0.0
  %138 = vmatprep.subr.mxu0 0.0
  %139 = vmatpush1.msra.mxu0 0.0
  %140 = vmatprep.subr.mxu0 0.0
  %141 = vmatpush1.msra.mxu0 0.0
  %142 = vmatprep.subr.mxu0 0.0
  %143 = vmatpush1.msra.mxu0 0.0
  %144 = vmatprep.subr.mxu0 0.0
  %145 = vmatpush1.msra.mxu0 0.0
  %146 = vmatprep.subr.mxu0 0.0
  %147 = vmatpush1.msra.mxu0 0.0
  %148 = vmatprep.subr.mxu0 0.0
  %149 = vmatpush1.msra.mxu0 0.0
  %150 = vmatprep.subr.mxu0 0.0
  %151 = vmatpush1.msra.mxu0 0.0
  %152 = vmatprep.subr.mxu0 0.0
  %153 = vmatpush1.msra.mxu0 0.0
  %154 = vmatprep.subr.mxu0 0.0
  %155 = vmatpush1.msra.mxu0 0.0
  %156 = vmatprep.subr.mxu0 0.0
  %157 = vmatpush1.msra.mxu0 0.0
  %158 = vmatprep.mubr.f32.mxu0 0.0
  %159 = vmatmul.mubr.f32.gmra.mrb[0].mxu0 %v47
  %v160 = vpop.f32.mrb[0].mxu0
  %v161 = vadd.f32 %v43, %v160
  %v162 = vpop.f32.mrb[0].mxu0
  %163 = vmatprep.mubr.f32.mxu0 0.0
  %164 = vmatmul.mubr.f32.gmra.mrb[0].mxu0 %v50
  %v165 = vpop.f32.mrb[0].mxu0
  %v166 = vadd.f32 %v43, %v165
  %v167 = vpop.f32.mrb[0].mxu0
  %168 = vmatprep.mubr.f32.mxu0 0.0
  %169 = vmatmul.mubr.f32.gmra.mrb[0].mxu0 %v53
  %v170 = vpop.f32.mrb[0].mxu0
  %v171 = vadd.f32 %v43, %v170
  %v172 = vpop.f32.mrb[0].mxu0
  %173 = vmatprep.mubr.f32.mxu0 0.0
  %174 = vmatmul.mubr.f32.gmra.mrb[0].mxu0 %v56
  %v175 = vpop.f32.mrb[0].mxu0
  %v176 = vadd.f32 %v43, %v175
  %v177 = vpop.f32.mrb[0].mxu0
  %178 = vmatprep.mubr.f32.mxu0 0.0
  %179 = vmatmul.mubr.f32.gmra.mrb[0].mxu0 %v59
  %v180 = vpop.f32.mrb[0].mxu0
  %v181 = vadd.f32 %v43, %v180
  %v182 = vpop.f32.mrb[0].mxu0
  %183 = vmatprep.mubr.f32.mxu0 0.0
  %184 = vmatmul.mubr.f32.gmra.mrb[0].mxu0 %v62
  %v185 = vpop.f32.mrb[0].mxu0
  %v186 = vadd.f32 %v43, %v185
  %v187 = vpop.f32.mrb[0].mxu0
  %188 = vmatprep.mubr.f32.mxu0 0.0
  %189 = vmatmul.mubr.f32.gmra.mrb[0].mxu0 %v65
  %v190 = vpop.f32.mrb[0].mxu0
  %v191 = vadd.f32 %v43, %v190
  %v192 = vpop.f32.mrb[0].mxu0
  %193 = vmatprep.mubr.f32.mxu0 0.0
  %194 = vmatmul.mubr.f32.gmra.mrb[0].mxu0 %v68
  %v195 = vpop.f32.mrb[0].mxu0
  %v196 = vadd.f32 %v43, %v195
  %v197 = vpop.f32.mrb[0].mxu0
  %198 = vmatprep.mubr.f32.mxu0 0.0
  %199 = vmatmul.mubr.f32.gmra.mrb[0].mxu0 %v71
  %v200 = vpop.f32.mrb[0].mxu0
  %v201 = vadd.f32 %v43, %v200
  %v202 = vpop.f32.mrb[0].mxu0
  %203 = vmatprep.mubr.f32.mxu0 0.0
  %204 = vmatmul.mubr.f32.gmra.mrb[0].mxu0 %v74
  %v205 = vpop.f32.mrb[0].mxu0
  %v206 = vadd.f32 %v43, %v205
  %v207 = vpop.f32.mrb[0].mxu0
  %208 = vmatprep.mubr.f32.mxu0 0.0
  %209 = vmatmul.mubr.f32.gmra.mrb[0].mxu0 %v77
  %v210 = vpop.f32.mrb[0].mxu0
  %v211 = vadd.f32 %v43, %v210
  %v212 = vpop.f32.mrb[0].mxu0
  %213 = vmatprep.mubr.f32.mxu0 0.0
  %214 = vmatmul.mubr.f32.gmra.mrb[0].mxu0 %v80
  %v215 = vpop.f32.mrb[0].mxu0
  %v216 = vadd.f32 %v43, %v215
  %v217 = vpop.f32.mrb[0].mxu0
  %218 = vmatprep.mubr.f32.mxu0 0.0
  %219 = vmatmul.mubr.f32.gmra.mrb[0].mxu0 %v83
  %v220 = vpop.f32.mrb[0].mxu0
  %v221 = vadd.f32 %v43, %v220
  %v222 = vpop.f32.mrb[0].mxu0
  %223 = vmatprep.mubr.f32.mxu0 0.0
  %224 = vmatmul.mubr.f32.gmra.mrb[0].mxu0 %v86
  %v225 = vpop.f32.mrb[0].mxu0
  %v226 = vadd.f32 %v43, %v225
  %v227 = vpop.f32.mrb[0].mxu0
  %228 = vmatprep.mubr.f32.mxu0 0.0
  %229 = vmatmul.mubr.f32.gmra.mrb[0].mxu0 %v89
  %v230 = vpop.f32.mrb[0].mxu0
  %v231 = vadd.f32 %v43, %v230
  %v232 = vpop.f32.mrb[0].mxu0
  %233 = vmatprep.mubr.f32.mxu0 0.0
  %234 = vmatmul.mubr.f32.gmra.mrb[0].mxu0 %v92
  %v235 = vpop.f32.mrb[0].mxu0
  %v236 = vadd.f32 %v43, %v235
  %v237 = vpop.f32.mrb[0].mxu0
  %238 = vdwg.mxu0
  %v239 = vmax.f32 %v161, 0.0
  %v240 = vmax.f32 %v166, 0.0
  %v241 = vmax.f32 %v171, 0.0
  %v242 = vmax.f32 %v176, 0.0
  %v243 = vmax.f32 %v181, 0.0
  %v244 = vmax.f32 %v186, 0.0
  %v245 = vmax.f32 %v191, 0.0
  %v246 = vmax.f32 %v196, 0.0
  %v247 = vmax.f32 %v201, 0.0
  %v248 = vmax.f32 %v206, 0.0
  %v249 = vmax.f32 %v211, 0.0
  %v250 = vmax.f32 %v216, 0.0
  %v251 = vmax.f32 %v221, 0.0
  %v252 = vmax.f32 %v226, 0.0
  %v253 = vmax.f32 %v231, 0.0
  %v254 = vmax.f32 %v236, 0.0
  %v255 = vld [vmem:[%s3] sm:$0xff]
  %v256 = vld [vmem:[%s3 + $0x8] sm:$0xff]
  %v257 = vld [vmem:[%s3 + $0x10] sm:$0xff]
  %v258 = vld [vmem:[%s3 + $0x18] sm:$0xff]
  %v259 = vld [vmem:[%s4] sm:$0x1]
  %v261 = vlaneseq
  %v262 = vshrl.u32 %v261, 7
  %v263 = vsub.s32 0, %v262
  %v264 = vrot.slane %v259, %v263
  %vm266 = vcmask 261120
  %v268 = vsel %vm266, %v239, 0
  %v271 = vsel %vm266, %v240, 0
  %v274 = vsel %vm266, %v241, 0
  %v277 = vsel %vm266, %v242, 0
  %v280 = vsel %vm266, %v243, 0
  %v283 = vsel %vm266, %v244, 0
  %v286 = vsel %vm266, %v245, 0
  %v289 = vsel %vm266, %v246, 0
  %v292 = vsel %vm266, %v247, 0
  %v295 = vsel %vm266, %v248, 0
  %v298 = vsel %vm266, %v249, 0
  %v301 = vsel %vm266, %v250, 0
  %v304 = vsel %vm266, %v251, 0
  %v307 = vsel %vm266, %v252, 0
  %v310 = vsel %vm266, %v253, 0
  %v313 = vsel %vm266, %v254, 0
  %315 = vmatprep.subr.mxu0 0.0
  %316 = vmatpush1.msra.mxu0 %v255
  %317 = vmatprep.subr.mxu0 0.0
  %318 = vmatpush1.msra.mxu0 %v256
  %319 = vmatprep.subr.mxu0 0.0
  %320 = vmatpush1.msra.mxu0 %v257
  %321 = vmatprep.subr.mxu0 0.0
  %322 = vmatpush1.msra.mxu0 %v258
  %323 = vmatprep.subr.mxu0 0.0
  %324 = vmatpush1.msra.mxu0 0.0
  %325 = vmatprep.subr.mxu0 0.0
  %326 = vmatpush1.msra.mxu0 0.0
  %327 = vmatprep.subr.mxu0 0.0
  %328 = vmatpush1.msra.mxu0 0.0
  %329 = vmatprep.subr.mxu0 0.0
  %330 = vmatpush1.msra.mxu0 0.0
  %331 = vmatprep.subr.mxu0 0.0
  %332 = vmatpush1.msra.mxu0 0.0
  %333 = vmatprep.subr.mxu0 0.0
  %334 = vmatpush1.msra.mxu0 0.0
  %335 = vmatprep.subr.mxu0 0.0
  %336 = vmatpush1.msra.mxu0 0.0
  %337 = vmatprep.subr.mxu0 0.0
  %338 = vmatpush1.msra.mxu0 0.0
  %339 = vmatprep.subr.mxu0 0.0
  %340 = vmatpush1.msra.mxu0 0.0
  %341 = vmatprep.subr.mxu0 0.0
  %342 = vmatpush1.msra.mxu0 0.0
  %343 = vmatprep.subr.mxu0 0.0
  %344 = vmatpush1.msra.mxu0 0.0
  %345 = vmatprep.subr.mxu0 0.0
  %346 = vmatpush1.msra.mxu0 0.0
  %347 = vmatprep.subr.mxu0 0.0
  %348 = vmatpush1.msra.mxu0 0.0
  %349 = vmatprep.subr.mxu0 0.0
  %350 = vmatpush1.msra.mxu0 0.0
  %351 = vmatprep.subr.mxu0 0.0
  %352 = vmatpush1.msra.mxu0 0.0
  %353 = vmatprep.subr.mxu0 0.0
  %354 = vmatpush1.msra.mxu0 0.0
  %355 = vmatprep.subr.mxu0 0.0
  %356 = vmatpush1.msra.mxu0 0.0
  %357 = vmatprep.subr.mxu0 0.0
  %358 = vmatpush1.msra.mxu0 0.0
  %359 = vmatprep.subr.mxu0 0.0
  %360 = vmatpush1.msra.mxu0 0.0
  %361 = vmatprep.subr.mxu0 0.0
  %362 = vmatpush1.msra.mxu0 0.0
  %363 = vmatprep.subr.mxu0 0.0
  %364 = vmatpush1.msra.mxu0 0.0
  %365 = vmatprep.subr.mxu0 0.0
  %366 = vmatpush1.msra.mxu0 0.0
  %367 = vmatprep.subr.mxu0 0.0
  %368 = vmatpush1.msra.mxu0 0.0
  %369 = vmatprep.subr.mxu0 0.0
  %370 = vmatpush1.msra.mxu0 0.0
  %371 = vmatprep.subr.mxu0 0.0
  %372 = vmatpush1.msra.mxu0 0.0
  %373 = vmatprep.subr.mxu0 0.0
  %374 = vmatpush1.msra.mxu0 0.0
  %375 = vmatprep.subr.mxu0 0.0
  %376 = vmatpush1.msra.mxu0 0.0
  %377 = vmatprep.subr.mxu0 0.0
  %378 = vmatpush1.msra.mxu0 0.0
  %379 = vmatprep.mubr.f32.mxu0 0.0
  %380 = vmatmul.mubr.f32.gmra.mrb[0].mxu0 %v268
  %v381 = vpop.f32.mrb[0].mxu0
  %v382 = vadd.f32 %v264, %v381
  %v383 = vpop.f32.mrb[0].mxu0
  %384 = vmatprep.mubr.f32.mxu0 0.0
  %385 = vmatmul.mubr.f32.gmra.mrb[0].mxu0 %v271
  %v386 = vpop.f32.mrb[0].mxu0
  %v387 = vadd.f32 %v264, %v386
  %v388 = vpop.f32.mrb[0].mxu0
  %389 = vmatprep.mubr.f32.mxu0 0.0
  %390 = vmatmul.mubr.f32.gmra.mrb[0].mxu0 %v274
  %v391 = vpop.f32.mrb[0].mxu0
  %v392 = vadd.f32 %v264, %v391
  %v393 = vpop.f32.mrb[0].mxu0
  %394 = vmatprep.mubr.f32.mxu0 0.0
  %395 = vmatmul.mubr.f32.gmra.mrb[0].mxu0 %v277
  %v396 = vpop.f32.mrb[0].mxu0
  %v397 = vadd.f32 %v264, %v396
  %v398 = vpop.f32.mrb[0].mxu0
  %399 = vmatprep.mubr.f32.mxu0 0.0
  %400 = vmatmul.mubr.f32.gmra.mrb[0].mxu0 %v280
  %v401 = vpop.f32.mrb[0].mxu0
  %v402 = vadd.f32 %v264, %v401
  %v403 = vpop.f32.mrb[0].mxu0
  %404 = vmatprep.mubr.f32.mxu0 0.0
  %405 = vmatmul.mubr.f32.gmra.mrb[0].mxu0 %v283
  %v406 = vpop.f32.mrb[0].mxu0
  %v407 = vadd.f32 %v264, %v406
  %v408 = vpop.f32.mrb[0].mxu0
  %409 = vmatprep.mubr.f32.mxu0 0.0
  %410 = vmatmul.mubr.f32.gmra.mrb[0].mxu0 %v286
  %v411 = vpop.f32.mrb[0].mxu0
  %v412 = vadd.f32 %v264, %v411
  %v413 = vpop.f32.mrb[0].mxu0
  %414 = vmatprep.mubr.f32.mxu0 0.0
  %415 = vmatmul.mubr.f32.gmra.mrb[0].mxu0 %v289
  %v416 = vpop.f32.mrb[0].mxu0
  %v417 = vadd.f32 %v264, %v416
  %v418 = vpop.f32.mrb[0].mxu0
  %419 = vmatprep.mubr.f32.mxu0 0.0
  %420 = vmatmul.mubr.f32.gmra.mrb[0].mxu0 %v292
  %v421 = vpop.f32.mrb[0].mxu0
  %v422 = vadd.f32 %v264, %v421
  %v423 = vpop.f32.mrb[0].mxu0
  %424 = vmatprep.mubr.f32.mxu0 0.0
  %425 = vmatmul.mubr.f32.gmra.mrb[0].mxu0 %v295
  %v426 = vpop.f32.mrb[0].mxu0
  %v427 = vadd.f32 %v264, %v426
  %v428 = vpop.f32.mrb[0].mxu0
  %429 = vmatprep.mubr.f32.mxu0 0.0
  %430 = vmatmul.mubr.f32.gmra.mrb[0].mxu0 %v298
  %v431 = vpop.f32.mrb[0].mxu0
  %v432 = vadd.f32 %v264, %v431
  %v433 = vpop.f32.mrb[0].mxu0
  %434 = vmatprep.mubr.f32.mxu0 0.0
  %435 = vmatmul.mubr.f32.gmra.mrb[0].mxu0 %v301
  %v436 = vpop.f32.mrb[0].mxu0
  %v437 = vadd.f32 %v264, %v436
  %v438 = vpop.f32.mrb[0].mxu0
  %439 = vmatprep.mubr.f32.mxu0 0.0
  %440 = vmatmul.mubr.f32.gmra.mrb[0].mxu0 %v304
  %v441 = vpop.f32.mrb[0].mxu0
  %v442 = vadd.f32 %v264, %v441
  %v443 = vpop.f32.mrb[0].mxu0
  %444 = vmatprep.mubr.f32.mxu0 0.0
  %445 = vmatmul.mubr.f32.gmra.mrb[0].mxu0 %v307
  %v446 = vpop.f32.mrb[0].mxu0
  %v447 = vadd.f32 %v264, %v446
  %v448 = vpop.f32.mrb[0].mxu0
  %449 = vmatprep.mubr.f32.mxu0 0.0
  %450 = vmatmul.mubr.f32.gmra.mrb[0].mxu0 %v310
  %v451 = vpop.f32.mrb[0].mxu0
  %v452 = vadd.f32 %v264, %v451
  %v453 = vpop.f32.mrb[0].mxu0
  %454 = vmatprep.mubr.f32.mxu0 0.0
  %455 = vmatmul.mubr.f32.gmra.mrb[0].mxu0 %v313
  %v456 = vpop.f32.mrb[0].mxu0
  %v457 = vadd.f32 %v264, %v456
  %v458 = vpop.f32.mrb[0].mxu0
  %459 = vdwg.mxu0
  %460 = vst.msk [vmem:[%s5] sm:$0xff] %vm45, %v382
  %461 = vst.msk [vmem:[%s5 + $0x8] sm:$0xff] %vm45, %v387
  %462 = vst.msk [vmem:[%s5 + $0x10] sm:$0xff] %vm45, %v392
  %463 = vst.msk [vmem:[%s5 + $0x18] sm:$0xff] %vm45, %v397
  %464 = vst.msk [vmem:[%s5 + $0x20] sm:$0xff] %vm45, %v402
  %465 = vst.msk [vmem:[%s5 + $0x28] sm:$0xff] %vm45, %v407
  %466 = vst.msk [vmem:[%s5 + $0x30] sm:$0xff] %vm45, %v412
  %467 = vst.msk [vmem:[%s5 + $0x38] sm:$0xff] %vm45, %v417
  %468 = vst.msk [vmem:[%s5 + $0x40] sm:$0xff] %vm45, %v422
  %469 = vst.msk [vmem:[%s5 + $0x48] sm:$0xff] %vm45, %v427
  %470 = vst.msk [vmem:[%s5 + $0x50] sm:$0xff] %vm45, %v432
  %471 = vst.msk [vmem:[%s5 + $0x58] sm:$0xff] %vm45, %v437
  %472 = vst.msk [vmem:[%s5 + $0x60] sm:$0xff] %vm45, %v442
  %473 = vst.msk [vmem:[%s5 + $0x68] sm:$0xff] %vm45, %v447
  %474 = vst.msk [vmem:[%s5 + $0x70] sm:$0xff] %vm45, %v452
  %475 = vst.msk [vmem:[%s5 + $0x78] sm:$0xff] %vm45, %v457
  // Predicated region
  $region22: #{tpu_custom_call.1} parent=0 // pred_check
    _
  $region23: #{tpu_custom_call.1} parent=0 // pred_check_branch
    %477 = sbr.rel (0) target = $region25
  $region24: #{tpu_custom_call.1} parent=0 // pred_region
    _
  $region25: #{tpu_custom_call.1} parent=0 // pred_fallthru
    _
  // Predicated region
  $region26: #{tpu_custom_call.1} parent=0 // pred_check
    _
  $region27: #{tpu_custom_call.1} parent=0 // pred_check_branch
    %479 = sbr.rel (0) target = $region29
  $region28: #{tpu_custom_call.1} parent=0 // pred_region
    _
  $region29: #{tpu_custom_call.1} parent=0 // pred_fallthru
    _

</llo_original>
